<compile_context>
chip_gen: v6e
topology: v6e:2x2x1
jax: 0.10.0
libtpu: 0.0.40
codegen_flags: <defaults>
</compile_context>

<pallas_src>
import jax
import jax.numpy as jnp
from jax.experimental import pallas as pl
from jax.experimental.pallas import tpu as pltpu

BN_EPS = 1e-5


# ----------------------------------------------------------------------------
# Fused Pallas kernel: conv-as-matmul + BN (batch stats) + ReLU
# ----------------------------------------------------------------------------
def _fused_conv_bn_relu_kernel(pt_ref, w_ref, g_ref, b_ref, o_ref):
    """out[Cout, M] = ReLU(BN(w[Cout, K] @ patches^T[K, M])).

    BatchNorm uses training-mode batch statistics over the M = N*Ho*Wo axis
    (biased variance, matching torch.nn.BatchNorm2d in training mode).
    """
    # MXU: bf16 operands, f32 accumulation.
    s = jnp.dot(w_ref[...], pt_ref[...],
                preferred_element_type=jnp.float32)                   # (Cout, M)

    # Per-channel batch statistics (lane reductions on the XLU).
    mean = jnp.mean(s, axis=-1, keepdims=True)                        # (Cout, 1)
    var = jnp.mean(jnp.square(s - mean), axis=-1, keepdims=True)      # biased var

    # Fold gamma / rsqrt / beta / mean into a single per-channel scale & shift
    # so the per-element epilogue is one mul + one add + one max.
    scale = g_ref[...] * jax.lax.rsqrt(var + BN_EPS)                  # (Cout, 1)
    shift = b_ref[...] - mean * scale                                 # (Cout, 1)
    o_ref[...] = jnp.maximum(s * scale + shift, 0.0)                  # ReLU


# ----------------------------------------------------------------------------
# Wrapper: NCHW -> im2col (JAX glue) -> fused kernel -> NCHW
# ----------------------------------------------------------------------------
def block_conv1_forward(x_nchw, conv_w, bn_gamma, bn_beta, *, stride=1, padding=1):
    """PyTorch Block_Conv1.forward: Conv2d(k=3, stride, padding=1; bias exactly
    cancelled by training-mode BN) -> BatchNorm2d (batch stats) -> ReLU.
    NCHW f32 in / NCHW f32 out."""
    N, Cin, H, W = x_nchw.shape
    Cout, _, k, _ = conv_w.shape
    Ho = (H + 2 * padding - k) // stride + 1
    Wo = (W + 2 * padding - k) // stride + 1
    M = N * Ho * Wo
    K = Cin * k * k

    # im2col, already transposed so M is the (lane) minor axis of the kernel
    # operand.  Plain-JAX glue: pure data movement, tiny at these sizes.
    xp = jnp.pad(x_nchw, ((0, 0), (0, 0), (padding, padding), (padding, padding)))
    cols = [
        xp[:, :, di:di + stride * Ho:stride, dj:dj + stride * Wo:stride]
        for di in range(k) for dj in range(k)
    ]                                                     # each (N, Cin, Ho, Wo)
    p = jnp.stack(cols, axis=0)                           # (k*k, N, Cin, Ho, Wo)
    patches_t = p.transpose(2, 0, 1, 3, 4).reshape(K, M)  # (Cin*k*k, N*Ho*Wo)

    # bf16 MXU operands; everything else stays f32.
    patches_t = patches_t.astype(jnp.bfloat16)
    w_t = conv_w.reshape(Cout, K).astype(jnp.bfloat16)    # matches (ci, di, dj) order

    out_t = pl.pallas_call(
        _fused_conv_bn_relu_kernel,
        out_shape=jax.ShapeDtypeStruct((Cout, M), jnp.float32),
        grid=(1,),
        in_specs=[
            pl.BlockSpec((K, M), lambda i: (0, 0)),
            pl.BlockSpec((Cout, K), lambda i: (0, 0)),
            pl.BlockSpec((Cout, 1), lambda i: (0, 0)),
            pl.BlockSpec((Cout, 1), lambda i: (0, 0)),
        ],
        out_specs=pl.BlockSpec((Cout, M), lambda i: (0, 0)),
        compiler_params=pltpu.CompilerParams(dimension_semantics=("arbitrary",)),
    )(patches_t, w_t, bn_gamma.reshape(Cout, 1), bn_beta.reshape(Cout, 1))

    # (Cout, N*Ho*Wo) -> (N, Cout, Ho, Wo) to match the PyTorch output layout.
    return out_t.reshape(Cout, N, Ho, Wo).transpose(1, 0, 2, 3)


# ----------------------------------------------------------------------------
# Example / self-check
# ----------------------------------------------------------------------------
if __name__ == "__main__":
    key = jax.random.PRNGKey(0)
    k_w, k_x = jax.random.split(key)

    N, Cin, H, W = 2, 3, 16, 16          # NCHW input, like the PyTorch module
    Cout, ksz, stride = 8, 3, 1          # Block_Conv1(in_planes=3, places=8)

    x = jax.random.normal(k_x, (N, Cin, H, W), jnp.float32)
    fan_in = Cin * ksz * ksz
    conv_w = jax.random.normal(k_w, (Cout, Cin, ksz, ksz), jnp.float32) * (2.0 / fan_in) ** 0.5
    # TODO(synk): Conv2d bias omitted — exactly cancelled by training-mode BN mean subtraction.
    gamma = jnp.ones((Cout,), jnp.float32)   # BatchNorm2d default init
    beta = jnp.zeros((Cout,), jnp.float32)

    out = block_conv1_forward(x, conv_w, gamma, beta, stride=stride, padding=1)
    out = jax.block_until_ready(out)
    assert out.shape == (N, Cout, H // stride, W // stride), out.shape

    # Plain-JAX reference (same bf16 operand rounding) for a correctness check.
    def reference(x, w, g, b):
        xb = x.astype(jnp.bfloat16).astype(jnp.float32)
        wb = w.astype(jnp.bfloat16).astype(jnp.float32)
        conv = jax.lax.conv_general_dilated(
            xb, wb, window_strides=(stride, stride), padding=((1, 1), (1, 1)),
            dimension_numbers=("NCHW", "OIHW", "NCHW"),
            precision=jax.lax.Precision.HIGHEST)
        mean = jnp.mean(conv, axis=(0, 2, 3), keepdims=True)
        var = jnp.var(conv, axis=(0, 2, 3), keepdims=True)
        y = (conv - mean) * jax.lax.rsqrt(var + BN_EPS)
        y = y * g.reshape(1, -1, 1, 1) + b.reshape(1, -1, 1, 1)
        return jnp.maximum(y, 0.0)

    ref = reference(x, conv_w, gamma, beta)
    max_err = float(jnp.max(jnp.abs(out - ref)))
    assert bool(jnp.all(jnp.isfinite(out)))
    assert max_err < 2e-2, max_err
    print("KERNEL_OK")
</pallas_src>

<mosaic_0001>
module attributes {stable_mosaic.version = 11 : i64} {
  func.func @_fused_conv_bn_relu_kernel(%arg0: i32, %arg1: memref<27x512xbf16, #tpu.memory_space<vmem>>, %arg2: memref<8x27xbf16, #tpu.memory_space<vmem>>, %arg3: memref<8x1xf32, #tpu.memory_space<vmem>>, %arg4: memref<8x1xf32, #tpu.memory_space<vmem>>, %arg5: memref<8x512xf32, #tpu.memory_space<vmem>>) attributes {dimension_semantics = [#tpu.dimension_semantics<arbitrary>], iteration_bounds = array<i64: 1>, scalar_prefetch = 0 : i64, scratch_operands = 0 : i64, tpu.core_type = #tpu.core_type<tc>, window_params = [{pipeline_mode = #tpu.pipeline_mode<synchronous>, transform_indices = @transform_0, window_bounds = array<i64: 27, 512>}, {pipeline_mode = #tpu.pipeline_mode<synchronous>, transform_indices = @transform_1, window_bounds = array<i64: 8, 27>}, {pipeline_mode = #tpu.pipeline_mode<synchronous>, transform_indices = @transform_2, window_bounds = array<i64: 8, 1>}, {pipeline_mode = #tpu.pipeline_mode<synchronous>, transform_indices = @transform_3, window_bounds = array<i64: 8, 1>}, {pipeline_mode = #tpu.pipeline_mode<synchronous>, transform_indices = @transform_4, window_bounds = array<i64: 8, 512>}]} {
    %c0 = arith.constant 0 : index
    %c0_0 = arith.constant 0 : index
    %0 = vector.load %arg2[%c0, %c0_0] : memref<8x27xbf16, #tpu.memory_space<vmem>>, vector<8x27xbf16>
    %c0_1 = arith.constant 0 : index
    %c0_2 = arith.constant 0 : index
    %1 = vector.load %arg1[%c0_1, %c0_2] : memref<27x512xbf16, #tpu.memory_space<vmem>>, vector<27x512xbf16>
    %cst = arith.constant dense<0.000000e+00> : vector<8x512xf32>
    %2 = tpu.matmul %0, %1, %cst {dimension_numbers = #tpu.dot_dimension_numbers<[1], [0], [0], [1], [0, 0, 1, 1], [], []>} : vector<8x27xbf16>, vector<27x512xbf16>, vector<8x512xf32> -> vector<8x512xf32>
    %cst_3 = arith.constant dense<0.000000e+00> : vector<8xf32>
    %3 = vector.multi_reduction <add>, %2, %cst_3 [1] : vector<8x512xf32> to vector<8xf32>
    %4 = vector.shape_cast %3 : vector<8xf32> to vector<8x1xf32>
    %cst_4 = arith.constant 5.120000e+02 : f32
    %5 = vector.broadcast %cst_4 : f32 to vector<8x1xf32>
    %6 = arith.divf %4, %5 : vector<8x1xf32>
    %7 = vector.broadcast %6 : vector<8x1xf32> to vector<8x512xf32>
    %8 = arith.subf %2, %7 : vector<8x512xf32>
    %9 = arith.mulf %8, %8 : vector<8x512xf32>
    %cst_5 = arith.constant dense<0.000000e+00> : vector<8xf32>
    %10 = vector.multi_reduction <add>, %9, %cst_5 [1] : vector<8x512xf32> to vector<8xf32>
    %11 = vector.shape_cast %10 : vector<8xf32> to vector<8x1xf32>
    %cst_6 = arith.constant 5.120000e+02 : f32
    %12 = vector.broadcast %cst_6 : f32 to vector<8x1xf32>
    %13 = arith.divf %11, %12 : vector<8x1xf32>
    %c0_7 = arith.constant 0 : index
    %c0_8 = arith.constant 0 : index
    %14 = vector.load %arg3[%c0_7, %c0_8] : memref<8x1xf32, #tpu.memory_space<vmem>>, vector<8x1xf32>
    %cst_9 = arith.constant 9.99999974E-6 : f32
    %15 = vector.broadcast %cst_9 : f32 to vector<8x1xf32>
    %16 = arith.addf %13, %15 : vector<8x1xf32>
    %17 = math.rsqrt %16 : vector<8x1xf32>
    %18 = arith.mulf %14, %17 : vector<8x1xf32>
    %c0_10 = arith.constant 0 : index
    %c0_11 = arith.constant 0 : index
    %19 = vector.load %arg4[%c0_10, %c0_11] : memref<8x1xf32, #tpu.memory_space<vmem>>, vector<8x1xf32>
    %20 = arith.mulf %6, %18 : vector<8x1xf32>
    %21 = arith.subf %19, %20 : vector<8x1xf32>
    %22 = vector.broadcast %18 : vector<8x1xf32> to vector<8x512xf32>
    %23 = arith.mulf %2, %22 : vector<8x512xf32>
    %24 = vector.broadcast %21 : vector<8x1xf32> to vector<8x512xf32>
    %25 = arith.addf %23, %24 : vector<8x512xf32>
    %cst_12 = arith.constant 0.000000e+00 : f32
    %26 = vector.broadcast %cst_12 : f32 to vector<8x512xf32>
    %27 = arith.maximumf %25, %26 : vector<8x512xf32>
    %c0_13 = arith.constant 0 : index
    %c0_14 = arith.constant 0 : index
    %28 = vector.load %arg5[%c0_13, %c0_14] : memref<8x512xf32, #tpu.memory_space<vmem>>, vector<8x512xf32>
    tpu.vector_store %arg5[%c0_13, %c0_14], %27 {strides = array<i32>} : memref<8x512xf32, #tpu.memory_space<vmem>>, vector<8x512xf32>,
    return
  }
  func.func @transform_0(%arg0: i32) -> (i32, i32) {
    %c0_i32 = arith.constant 0 : i32
    %c0_i32_0 = arith.constant 0 : i32
    %c0_i32_1 = arith.constant 0 : i32
    return %c0_i32, %c0_i32_0 : i32, i32
  }
  func.func @transform_1(%arg0: i32) -> (i32, i32) {
    %c0_i32 = arith.constant 0 : i32
    %c0_i32_0 = arith.constant 0 : i32
    %c0_i32_1 = arith.constant 0 : i32
    return %c0_i32, %c0_i32_0 : i32, i32
  }
  func.func @transform_2(%arg0: i32) -> (i32, i32) {
    %c0_i32 = arith.constant 0 : i32
    %c0_i32_0 = arith.constant 0 : i32
    %c0_i32_1 = arith.constant 0 : i32
    return %c0_i32, %c0_i32_0 : i32, i32
  }
  func.func @transform_3(%arg0: i32) -> (i32, i32) {
    %c0_i32 = arith.constant 0 : i32
    %c0_i32_0 = arith.constant 0 : i32
    %c0_i32_1 = arith.constant 0 : i32
    return %c0_i32, %c0_i32_0 : i32, i32
  }
  func.func @transform_4(%arg0: i32) -> (i32, i32) {
    %c0_i32 = arith.constant 0 : i32
    %c0_i32_0 = arith.constant 0 : i32
    %c0_i32_1 = arith.constant 0 : i32
    return %c0_i32, %c0_i32_0 : i32, i32
  }
}

</mosaic_0001>

<llo_original>
// kernel: tpu_custom_call.1
$region0: #{tpu_custom_call.1}
  #allocation0 [shape = 'u32[]', space=smem, size = 0x4, offset = 0x4, fixed_abs, tag = 'smem constant byte address 0x4 - core index']
  #allocation1 [shape = 'u32[144,128]{1,0:T(1,128)}', space=vmem, size = 0x12000, scoped, tag = 'internal scratch']
  %s0 = inlined_call_operand.hbm [shape: bf16[27,512], index: 0, kind: input, shape index: {}]
  %s1 = inlined_call_operand.vmem [shape: bf16[8,27], index: 1, kind: input, shape index: {}]
  %s2 = inlined_call_operand.vmem [shape: f32[8,1], index: 2, kind: input, shape index: {}]
  %s3 = inlined_call_operand.vmem [shape: f32[8,1], index: 3, kind: input, shape index: {}]
  %s4 = inlined_call_operand.hbm [shape: f32[8,512], index: 4, kind: output, shape index: {}]
  %s5 = sld [smem:[#allocation0]]
  $region30: #{tpu_custom_call.1} parent=0
    _
  %s7 = ssub.s32 1, %s5
  %s8 = scalar_select 0, %s7, %s5
  $region1: #{tpu_custom_call.1} parent=0
    #allocation2 [shape = 'u8[32768]{0}', space=vmem, size = 0x8000, scoped, tag = 'input window, operand 0, single buffered']
    #allocation3 [shape = 's32[1]{0}', space=sflag, size = 0x4, scoped, tag = 'scoped memory for tpu_custom_call.1']
    #allocation4 [shape = 's32[1]{0}', space=sflag, size = 0x4, scoped, tag = 'scoped memory for tpu_custom_call.1']
    #allocation5 [shape = 'u8[16384]{0}', space=vmem, size = 0x4000, scoped, tag = 'output window, operand 0, single buffered']
    %9 = vsyncpa [#allocation3], 0
    %10 = vsyncpa [#allocation4], 0
    // Predicated region
    $region2: #{tpu_custom_call.1} parent=1 // pred_check
      _
    $region3: #{tpu_custom_call.1} parent=1 // pred_check_branch
      %12 = sbr.rel (0) target = $region5
    $region4: #{tpu_custom_call.1} parent=1 // pred_region
      %s14 = ssub.s32 1024, 1024
      %15 = vsyncadd [#allocation3], %s14
      %s16 = sshll.u32 [#allocation2], 4
      %s17 = int_to_ptr.vmem [resolvable:$true] %s16
      %22 = dma.hbm_to_vmem [thread:$0]  %s0, 1024, %s17, [#allocation3], 256, 256, 16
    $region5: #{tpu_custom_call.1} parent=1 // pred_fallthru
      _
    // Predicated region
    $region6: #{tpu_custom_call.1} parent=1 // pred_check
      _
    $region7: #{tpu_custom_call.1} parent=1 // pred_check_branch
      %24 = sbr.rel (0) target = $region9
    $region8: #{tpu_custom_call.1} parent=1 // pred_region
      _
    $region9: #{tpu_custom_call.1} parent=1 // pred_fallthru
      _
    // Predicated region
    $region10: #{tpu_custom_call.1} parent=1 // pred_check
      _
    $region11: #{tpu_custom_call.1} parent=1 // pred_check_branch
      %26 = sbr.rel (0) target = $region13
    $region12: #{tpu_custom_call.1} parent=1 // pred_region
      _
    $region13: #{tpu_custom_call.1} parent=1 // pred_fallthru
      _
    // Predicated region
    $region14: #{tpu_custom_call.1} parent=1 // pred_check
      _
    $region15: #{tpu_custom_call.1} parent=1 // pred_check_branch
      %28 = sbr.rel (0) target = $region17
    $region16: #{tpu_custom_call.1} parent=1 // pred_region
      _
    $region17: #{tpu_custom_call.1} parent=1 // pred_fallthru
      _
    // Predicated region
    $region18: #{tpu_custom_call.1} parent=1 // pred_check
      _
    $region19: #{tpu_custom_call.1} parent=1 // pred_check_branch
      %30 = sbr.rel (0) target = $region21
    $region20: #{tpu_custom_call.1} parent=1 // pred_region
      %31 = dma.done [#allocation3], 1024
    $region21: #{tpu_custom_call.1} parent=1 // pred_fallthru
      _
    %v33 = vld [vmem:[%s1] sm:$0xf]
    %v34 = vld [vmem:[#allocation2] sm:$0xff]
    %v35 = vld [vmem:[#allocation2 + $0x8] sm:$0xff]
    %v36 = vld [vmem:[#allocation2 + $0x10] sm:$0xff]
    %v37 = vld [vmem:[#allocation2 + $0x18] sm:$0xff]
    %v38 = vld [vmem:[#allocation2 + $0x20] sm:$0xff]
    %v39 = vld [vmem:[#allocation2 + $0x28] sm:$0xff]
    %v40 = vld [vmem:[#allocation2 + $0x30] sm:$0x33]
    %v41 = vld [vmem:[#allocation2 + $0x38] sm:$0x33]
    %v50 = vunpack.c.l.b16 %v34
    %v51 = vunpack.c.h.b16 %v34
    %v52 = vunpack.c.l.b16 %v35
    %v53 = vunpack.c.h.b16 %v35
    %v54 = vunpack.c.l.b16 %v36
    %v55 = vunpack.c.h.b16 %v36
    %v56 = vunpack.c.l.b16 %v37
    %v57 = vunpack.c.h.b16 %v37
    %v58 = vunpack.c.l.b16 %v38
    %v59 = vunpack.c.h.b16 %v38
    %v60 = vunpack.c.l.b16 %v39
    %v61 = vunpack.c.h.b16 %v39
    %v62 = vunpack.c.l.b16 %v40
    %v63 = vunpack.c.h.b16 %v40
    %v64 = vunpack.c.l.b16 %v41
    %v65 = vunpack.c.h.b16 %v41
    %v66 = vpack.c.b16 %v54, %v50
    %v67 = vpack.c.b16 %v55, %v51
    %v68 = vpack.c.b16 %v56, %v52
    %v69 = vpack.c.b16 %v57, %v53
    %v70 = vpack.c.b16 %v62, %v58
    %v71 = vpack.c.b16 %v63, %v59
    %v72 = vpack.c.b16 %v64, %v60
    %v73 = vpack.c.b16 %v65, %v61
    %vm78 = vcmask 220160
    %v80 = vsel %vm78, %v33, 0
    %vm82 = vcmask 1044480
    %vm83 = vcmask 1045504
    %v84 = vsel %vm82, 4294967295, 65535
    %v85 = vsel %vm83, %v84, 0
    %v87 = vand.u32 %v70, %v85
    %v90 = vand.u32 %v71, %v85
    %v93 = vand.u32 %v72, %v85
    %v96 = vand.u32 %v73, %v85
    %98 = vmatprep.subr.bf16.mxu0 0
    %99 = vmatpush1.bf16.msra.mxu0 0
    %100 = vmatprep.subr.bf16.mxu0 0
    %101 = vmatpush1.bf16.msra.mxu0 0
    %102 = vmatprep.subr.bf16.mxu0 0
    %103 = vmatpush1.bf16.msra.mxu0 0
    %104 = vmatprep.subr.bf16.mxu0 0
    %105 = vmatpush1.bf16.msra.mxu0 0
    %106 = vmatprep.subr.bf16.mxu0 0
    %107 = vmatpush1.bf16.msra.mxu0 0
    %108 = vmatprep.subr.bf16.mxu0 0
    %109 = vmatpush1.bf16.msra.mxu0 0
    %110 = vmatprep.subr.bf16.mxu0 %v90
    %111 = vmatpush1.bf16.msra.mxu0 %v87
    %112 = vmatprep.subr.bf16.mxu0 %v67
    %113 = vmatpush1.bf16.msra.mxu0 %v66
    %114 = vmatprep.subr.bf16.mxu0 0
    %115 = vmatpush2.bf16.msra.mxu0 0
    %116 = vmatprep.subr.bf16.mxu0 0
    %117 = vmatpush2.bf16.msra.mxu0 0
    %118 = vmatprep.subr.bf16.mxu0 0
    %119 = vmatpush2.bf16.msra.mxu0 0
    %120 = vmatprep.subr.bf16.mxu0 0
    %121 = vmatpush2.bf16.msra.mxu0 0
    %122 = vmatprep.subr.bf16.mxu0 0
    %123 = vmatpush2.bf16.msra.mxu0 0
    %124 = vmatprep.subr.bf16.mxu0 0
    %125 = vmatpush2.bf16.msra.mxu0 0
    %126 = vmatprep.subr.bf16.mxu0 0
    %127 = vmatpush2.bf16.msra.mxu0 0
    %128 = vmatprep.subr.bf16.mxu0 0
    %129 = vmatpush2.bf16.msra.mxu0 0
    %130 = vmatprep.mubr.bf16.mxu0 0
    %131 = vmatmul.mubr.bf16.gmra.mxu0 %v80
    %v132 = vpop.f32.mrf.mxu0
    %v133 = vadd.f32 0.0, %v132
    %v134 = vpop.f32.mrf.mxu0
    %v135 = vadd.f32 0.0, %v134
    %v136 = vpop.f32.mrf.mxu0
    %v137 = vpop.f32.mrf.mxu0
    %138 = vdwg.mxu0
    %139 = vmatprep.subr.bf16.mxu0 0
    %140 = vmatpush1.bf16.msra.mxu0 0
    %141 = vmatprep.subr.bf16.mxu0 0
    %142 = vmatpush1.bf16.msra.mxu0 0
    %143 = vmatprep.subr.bf16.mxu0 0
    %144 = vmatpush1.bf16.msra.mxu0 0
    %145 = vmatprep.subr.bf16.mxu0 0
    %146 = vmatpush1.bf16.msra.mxu0 0
    %147 = vmatprep.subr.bf16.mxu0 0
    %148 = vmatpush1.bf16.msra.mxu0 0
    %149 = vmatprep.subr.bf16.mxu0 0
    %150 = vmatpush1.bf16.msra.mxu0 0
    %151 = vmatprep.subr.bf16.mxu0 %v96
    %152 = vmatpush1.bf16.msra.mxu0 %v93
    %153 = vmatprep.subr.bf16.mxu0 %v69
    %154 = vmatpush1.bf16.msra.mxu0 %v68
    %155 = vmatprep.subr.bf16.mxu0 0
    %156 = vmatpush2.bf16.msra.mxu0 0
    %157 = vmatprep.subr.bf16.mxu0 0
    %158 = vmatpush2.bf16.msra.mxu0 0
    %159 = vmatprep.subr.bf16.mxu0 0
    %160 = vmatpush2.bf16.msra.mxu0 0
    %161 = vmatprep.subr.bf16.mxu0 0
    %162 = vmatpush2.bf16.msra.mxu0 0
    %163 = vmatprep.subr.bf16.mxu0 0
    %164 = vmatpush2.bf16.msra.mxu0 0
    %165 = vmatprep.subr.bf16.mxu0 0
    %166 = vmatpush2.bf16.msra.mxu0 0
    %167 = vmatprep.subr.bf16.mxu0 0
    %168 = vmatpush2.bf16.msra.mxu0 0
    %169 = vmatprep.subr.bf16.mxu0 0
    %170 = vmatpush2.bf16.msra.mxu0 0
    %171 = vmatprep.mubr.bf16.mxu0 0
    %172 = vmatmul.mubr.bf16.gmra.mxu0 %v80
    %v173 = vpop.f32.mrf.mxu0
    %v174 = vadd.f32 0.0, %v173
    %v175 = vpop.f32.mrf.mxu0
    %v176 = vadd.f32 0.0, %v175
    %v177 = vpop.f32.mrf.mxu0
    %v178 = vpop.f32.mrf.mxu0
    %179 = vdwg.mxu0
    %v180 = vadd.f32 %v133, %v135
    %v181 = vadd.f32 %v180, %v174
    %v182 = vadd.f32 %v181, %v176
    %183 = vadd.xlane.f32.xlu0 %v182
    %v184 = vpop.xlane.xlu0 %183
    %v185 = vrcp.pop 512.0
    %v186 = vmul.f32 %v184, %v185
    %v187 = vsub.f32 %v133, %v186
    %v188 = vsub.f32 %v135, %v186
    %v189 = vsub.f32 %v174, %v186
    %v190 = vsub.f32 %v176, %v186
    %v191 = vmul.f32 %v187, %v187
    %v192 = vmul.f32 %v188, %v188
    %v193 = vmul.f32 %v189, %v189
    %v194 = vmul.f32 %v190, %v190
    %v195 = vadd.f32 %v191, %v192
    %v196 = vadd.f32 %v195, %v193
    %v197 = vadd.f32 %v196, %v194
    %198 = vadd.xlane.f32.xlu0 %v197
    %v199 = vpop.xlane.xlu0 %198
    %v200 = vmul.f32 %v199, %v185
    %v201 = vld [vmem:[%s2] sm:$0xff]
    %v202 = vadd.f32 %v200, 1e-05
    %v203 = vrsqrt.pop %v202
    %v204 = vmul.f32 %v201, %v203
    %v205 = vld [vmem:[%s3] sm:$0xff]
    %v206 = vmul.f32 %v186, %v204
    %v207 = vsub.f32 %v205, %v206
    %209 = vset.pattern.permute.xlu0 0
    %210 = vperm.xlu0 %209, %v204
    %v211 = vpop.permute.xlu0 %210
    %v213 = vmul.f32 %v133, %v211
    %v214 = vmul.f32 %v135, %v211
    %v215 = vmul.f32 %v174, %v211
    %v216 = vmul.f32 %v176, %v211
    %218 = vset.pattern.permute.xlu0 0
    %219 = vperm.xlu0 %218, %v207
    %v220 = vpop.permute.xlu0 %219
    %v222 = vadd.f32 %v213, %v220
    %v223 = vadd.f32 %v214, %v220
    %v224 = vadd.f32 %v215, %v220
    %v225 = vadd.f32 %v216, %v220
    %v226 = vmax.f32 %v222, 0.0
    %v227 = vmax.f32 %v223, 0.0
    %v228 = vmax.f32 %v224, 0.0
    %v229 = vmax.f32 %v225, 0.0
    %230 = vst [vmem:[#allocation5] sm:$0xff] %v226
    %231 = vst [vmem:[#allocation5 + $0x8] sm:$0xff] %v227
    %232 = vst [vmem:[#allocation5 + $0x10] sm:$0xff] %v228
    %233 = vst [vmem:[#allocation5 + $0x18] sm:$0xff] %v229
    // Predicated region
    $region22: #{tpu_custom_call.1} parent=1 // pred_check
      _
    $region23: #{tpu_custom_call.1} parent=1 // pred_check_branch
      %235 = sbr.rel (0) target = $region25
    $region24: #{tpu_custom_call.1} parent=1 // pred_region
      %s237 = ssub.s32 512, 512
      %238 = vsyncadd [#allocation4], %s237
      %s240 = sshll.u32 [#allocation5], 4
      %s241 = int_to_ptr.vmem [resolvable:$true] %s240
      %243 = dma.vmem_to_hbm [thread:$0]  %s241, 512, %s4, [#allocation4]
    $region25: #{tpu_custom_call.1} parent=1 // pred_fallthru
      _
    // Predicated region
    $region26: #{tpu_custom_call.1} parent=1 // pred_check
      _
    $region27: #{tpu_custom_call.1} parent=1 // pred_check_branch
      %245 = sbr.rel (0) target = $region29
    $region28: #{tpu_custom_call.1} parent=1 // pred_region
      %246 = dma.done [#allocation4], 512
    $region29: #{tpu_custom_call.1} parent=1 // pred_fallthru
      _
    %247 = vsyncpa [#allocation3], 1
    %248 = vsyncpa [#allocation4], 1

</llo_original>
